<compile_context>
chip_gen: v7x
topology: tpu7x:2x2x1
jax: 0.10.0
libtpu: 0.0.40
codegen_flags: <defaults>
</compile_context>

<pallas_src>
import functools

import jax
import jax.numpy as jnp
from jax import lax
from jax.experimental import pallas as pl
from jax.experimental.pallas import tpu as pltpu


LANE = 128          # channels are padded to a multiple of the TPU lane width


def _round_up(x, m):
    return (x + m - 1) // m * m


# ----------------------------------------------------------------------------
# Chip-aware knobs
# ----------------------------------------------------------------------------
@functools.lru_cache(maxsize=None)
def _vmem_capacity():
    try:
        return int(pltpu.get_tpu_info().vmem_capacity_bytes)
    except Exception:
        return 128 * 1024 * 1024


def _vmem_limit():
    # ~60% of physical VMEM: leaves headroom for Pallas-internal temporaries
    # and surrounding XLA fusions (decisive on v7x's 64 MiB/TC).
    return max(int(_vmem_capacity() * 0.6), 16 * 1024 * 1024)


@functools.lru_cache(maxsize=None)
def _is_v5e():
    try:
        kind = jax.devices()[0].device_kind.lower()
    except Exception:
        return False
    return ("v5 lite" in kind) or ("v5e" in kind) or ("v5lite" in kind)


def _pick_row_tile(H, target):
    """Largest divisor of H that is <= target (no whole-image fallback)."""
    # TODO(synk): for ragged H, switch to pl.cdiv gridding + in-kernel masking.
    t = max(1, min(H, target))
    while H % t:
        t -= 1
    return t


def _row_tile(H, W, C, target, itemsize=2, budget=2 * 1024 * 1024):
    t = target
    while t > 8 and t * W * C * itemsize > budget:
        t //= 2
    return _pick_row_tile(H, t)


# ----------------------------------------------------------------------------
# Kernel 1: per-channel sum / sum-of-squares (batch-norm statistics, pass 1).
# Per-batch partial accumulators; batch axis "parallel" (megacore-friendly).
# ----------------------------------------------------------------------------
def _stats_kernel(x_ref, sum_ref, sq_ref):
    @pl.when(pl.program_id(1) == 0)
    def _init():
        sum_ref[...] = jnp.zeros_like(sum_ref)
        sq_ref[...] = jnp.zeros_like(sq_ref)

    x = x_ref[0].astype(jnp.float32)                      # (TR, W, C)
    C = x.shape[-1]
    sum_ref[...] += jnp.sum(x, axis=(0, 1)).reshape(1, 1, C)
    sq_ref[...] += jnp.sum(x * x, axis=(0, 1)).reshape(1, 1, C)


def channel_stats(x):
    """x: (N, H, W, C) -> (sum, sumsq), each (1, C) float32."""
    N, H, W, C = x.shape
    big = _vmem_capacity() >= 100 * 1024 * 1024
    tr = _row_tile(H, W, C, 32 if big else 16,
                   itemsize=jnp.dtype(x.dtype).itemsize, budget=4 * 1024 * 1024)
    s, sq = pl.pallas_call(
        _stats_kernel,
        out_shape=(jax.ShapeDtypeStruct((N, 1, C), jnp.float32),
                   jax.ShapeDtypeStruct((N, 1, C), jnp.float32)),
        grid=(N, H // tr),
        in_specs=[pl.BlockSpec((1, tr, W, C), lambda n, r: (n, r, 0, 0))],
        out_specs=(pl.BlockSpec((1, 1, C), lambda n, r: (n, 0, 0)),
                   pl.BlockSpec((1, 1, C), lambda n, r: (n, 0, 0))),
        compiler_params=pltpu.CompilerParams(
            dimension_semantics=("parallel", "arbitrary"),
            vmem_limit_bytes=_vmem_limit()),
    )(x)
    return jnp.sum(s, axis=0), jnp.sum(sq, axis=0)        # (1, C) each


# ----------------------------------------------------------------------------
# Kernel 2: fused conditional-BN (precomputed mean / inv-std, per-sample
# gamma/beta) + ReLU + 3x3 "same" conv, optionally + fused 1x1 shortcut conv,
# optionally emitting per-channel sum/sumsq of its own output.
# ----------------------------------------------------------------------------
def _make_conv_kernel(tr, W, fuse_shortcut, emit_stats):
    def kernel(*refs):
        (xt_ref, xm_ref, xb_ref, mean_ref, inv_ref, g_ref, bt_ref,
         w_ref, bias_ref) = refs[:9]
        idx = 9
        if fuse_shortcut:
            xs_ref, w0_ref = refs[idx], refs[idx + 1]
            idx += 2
        if emit_stats:
            o_ref, sum_ref, sq_ref = refs[idx], refs[idx + 1], refs[idx + 2]
            idx += 3
        else:
            o_ref = refs[idx]
            idx += 1
        acc_ref = refs[idx]                      # (tr*W, ct) f32 VMEM scratch

        r = pl.program_id(2)                     # row-tile index (grid=(co,n,r))
        last_r = pl.num_programs(2) - 1
        C = xm_ref.shape[-1]
        Ct = o_ref.shape[-1]

        mean = mean_ref[...].reshape(1, 1, C)
        inv = inv_ref[...].reshape(1, 1, C)
        gam = g_ref[...]                         # (1, 1, C)
        bet = bt_ref[...]

        def act(v):                              # CBN normalize (f32) + ReLU
            v = v.astype(jnp.float32)
            return jnp.maximum(gam * (v - mean) * inv + bet, 0.0)

        # Row tile plus one halo row above/below; out-of-image halo rows are
        # zeroed *after* activation, which is exactly "same" zero padding.
        a_mid = act(xm_ref[0])                               # (tr, W, C)
        a_top = jnp.where(r > 0, act(xt_ref[0]), 0.0)        # (1, W, C)
        a_bot = jnp.where(r < last_r, act(xb_ref[0]), 0.0)   # (1, W, C)
        slab = jnp.concatenate([a_top, a_mid, a_bot],
                               axis=0).astype(jnp.bfloat16)  # (tr+2, W, C)

        # Channel-stacked slab: [col j-1 | col j | col j+1] along lanes, so the
        # 3x3 conv becomes 3 merged-K matmuls (K = 3C) instead of 9 small ones.
        zc = jnp.zeros((tr + 2, 1, C), jnp.bfloat16)
        left = jnp.concatenate([zc, slab[:, :W - 1, :]], axis=1)
        right = jnp.concatenate([slab[:, 1:, :], zc], axis=1)
        stacked = jnp.concatenate([left, slab, right], axis=2)   # (tr+2, W, 3C)

        # 3 matmuls, f32 MXU accumulation into explicit VMEM scratch.
        patch0 = stacked[0:tr].reshape(tr * W, 3 * C)
        acc_ref[...] = jnp.dot(patch0, w_ref[0],
                               preferred_element_type=jnp.float32)
        for ky in range(1, 3):
            patch = stacked[ky:ky + tr].reshape(tr * W, 3 * C)
            acc_ref[...] += jnp.dot(patch, w_ref[ky],
                                    preferred_element_type=jnp.float32)

        if fuse_shortcut:
            # 1x1 shortcut conv on the upsampled-input tile + residual add.
            xs = xs_ref[0].reshape(tr * W, xs_ref.shape[-1])
            acc_ref[...] += jnp.dot(xs, w0_ref[...],
                                    preferred_element_type=jnp.float32)

        out = acc_ref[...] + bias_ref[...].astype(jnp.float32)  # (tr*W, Ct)
        o_ref[...] = out.reshape(1, tr, W, Ct).astype(o_ref.dtype)

        if emit_stats:
            # Fused pass-1 statistics of this conv's output (for cond_bn2):
            # resident (1, Ct) accumulators over the "arbitrary" (n, r) axes.
            ps = jnp.sum(out, axis=0)[None, :]
            pq = jnp.sum(out * out, axis=0)[None, :]

            @pl.when(jnp.logical_and(pl.program_id(1) == 0, r == 0))
            def _init():
                sum_ref[...] = jnp.zeros_like(sum_ref)
                sq_ref[...] = jnp.zeros_like(sq_ref)

            sum_ref[...] += ps
            sq_ref[...] += pq

    return kernel


def conv3x3_cbn(x, mean, inv, gamma, beta, w3, bias, shortcut=None,
                emit_stats=False, out_dtype=jnp.bfloat16):
    """y = conv3x3(relu(gamma*(x-mean)*inv+beta), w3) + bias [+ xs @ w0].

    x:     (N, H, W, C)  bf16 activations (channels padded to LANE)
    mean:  (1, C) f32,  inv: (1, C) f32   precomputed batch statistics
    gamma: (N, 1, C) f32, beta: (N, 1, C) f32   per-sample conditional affine
    w3:    (3, 3*C, Cout) bf16 merged-K conv weights,  bias: (1, Cout) f32
    shortcut: optional (xs, w0): xs (N, H, W, Cs) bf16, w0 (Cs, Cout) bf16.
    emit_stats: also return per-channel (sum, sumsq) of the conv output.
    """
    N, H, W, C = x.shape
    Cout = w3.shape[-1]
    big = _vmem_capacity() >= 100 * 1024 * 1024
    tr = _row_tile(H, W, C, 16 if big else 8,
                   itemsize=jnp.dtype(x.dtype).itemsize, budget=2 * 1024 * 1024)
    # 256-wide Cout tiles only where the MXU is 256-wide (v6e/v7x); v5e's MXU
    # is 128-wide so wider tiles only add VMEM / vst pressure there.
    ct = 256 if (Cout % 256 == 0 and not _is_v5e()) else 128
    ct = min(ct, Cout)
    grid = (Cout // ct, N, H // tr)    # Cout-tile outermost -> weights resident

    def top_map(co, n, r):
        return (n, jnp.maximum(r * tr - 1, 0), 0, 0)

    def mid_map(co, n, r):
        return (n, r, 0, 0)

    def bot_map(co, n, r):
        return (n, jnp.minimum((r + 1) * tr, H - 1), 0, 0)

    in_specs = [
        pl.BlockSpec((1, 1, W, C), top_map),                      # halo row above
        pl.BlockSpec((1, tr, W, C), mid_map),                     # row tile
        pl.BlockSpec((1, 1, W, C), bot_map),                      # halo row below
        pl.BlockSpec((1, C), lambda co, n, r: (0, 0)),            # mean
        pl.BlockSpec((1, C), lambda co, n, r: (0, 0)),            # inv std
        pl.BlockSpec((1, 1, C), lambda co, n, r: (n, 0, 0)),      # gamma
        pl.BlockSpec((1, 1, C), lambda co, n, r: (n, 0, 0)),      # beta
        pl.BlockSpec((3, 3 * C, ct), lambda co, n, r: (0, 0, co)),  # conv weights
        pl.BlockSpec((1, ct), lambda co, n, r: (0, co)),          # bias
    ]
    args = [x, x, x, mean, inv, gamma, beta, w3, bias]
    if shortcut is not None:
        xs, w0 = shortcut
        in_specs += [
            pl.BlockSpec((1, tr, W, xs.shape[-1]), mid_map),
            pl.BlockSpec((xs.shape[-1], ct), lambda co, n, r: (0, co)),
        ]
        args += [xs, w0]

    out_shapes = [jax.ShapeDtypeStruct((N, H, W, Cout), out_dtype)]
    out_specs = [pl.BlockSpec((1, tr, W, ct), lambda co, n, r: (n, r, 0, co))]
    if emit_stats:
        out_shapes += [jax.ShapeDtypeStruct((1, Cout), jnp.float32)] * 2
        out_specs += [pl.BlockSpec((1, ct), lambda co, n, r: (0, co))] * 2
        dims = ("parallel", "arbitrary", "arbitrary")   # accumulate over (n, r)
    else:
        dims = ("parallel", "parallel", "parallel")

    outs = pl.pallas_call(
        _make_conv_kernel(tr, W, shortcut is not None, emit_stats),
        out_shape=tuple(out_shapes),
        grid=grid,
        in_specs=in_specs,
        out_specs=tuple(out_specs),
        scratch_shapes=[pltpu.VMEM((tr * W, ct), jnp.float32)],
        compiler_params=pltpu.CompilerParams(
            dimension_semantics=dims,
            vmem_limit_bytes=_vmem_limit()),
    )(*args)
    if emit_stats:
        return outs[0], outs[1], outs[2]
    return outs[0]


# ----------------------------------------------------------------------------
# Glue (plain JAX): upsample, channel padding, spectral norm, embedding.
# ----------------------------------------------------------------------------
def upsample2x_nearest(x):  # NHWC, matches F.interpolate(scale_factor=2,'nearest')
    x = jnp.repeat(x, 2, axis=1)
    return jnp.repeat(x, 2, axis=2)


def spectral_normalize(w, n_iter=8, eps=1e-12):
    """w: (Cout, Cin, KH, KW) PyTorch layout.
    # TODO(synk): PyTorch spectral_norm does ONE power-iteration step with a
    # persistent random `u`; we use a deterministic start and more iterations
    # (same sigma in the limit, not step-for-step identical)."""
    cout = w.shape[0]
    wm = w.reshape(cout, -1)
    u = jnp.ones((cout,), w.dtype) / jnp.sqrt(jnp.float32(cout))
    v = None
    for _ in range(n_iter):
        v = wm.T @ u
        v = v / (jnp.linalg.norm(v) + eps)
        u = wm @ v
        u = u / (jnp.linalg.norm(u) + eps)
    sigma = u @ (wm @ v)
    return w / sigma


def _pad_last(a, target):
    pad = target - a.shape[-1]
    if pad == 0:
        return a
    return jnp.pad(a, [(0, 0)] * (a.ndim - 1) + [(0, pad)])


def to_conv_weight(w, cin_p, cout_p):
    """(Cout, Cin, KH, KW) -> (KH, KW*Cin_p, Cout_p) bf16 merged-K weights.

    The K dim is ordered (kx, channel) to match the in-kernel channel-stacked
    activation slab [col j-1 | col j | col j+1]."""
    cout, cin, kh, kw = w.shape
    w = jnp.transpose(w, (2, 3, 1, 0))                    # (KH, KW, Cin, Cout)
    w = jnp.pad(w, ((0, 0), (0, 0), (0, cin_p - cin), (0, cout_p - cout)))
    return w.reshape(kh, kw * cin_p, cout_p).astype(jnp.bfloat16)


def embedding_gamma_beta(embed_w, labels, num_features, c_pad):
    e = jnp.take(embed_w, labels, axis=0)                       # (N, 2*nf)
    gamma = _pad_last(e[:, :num_features], c_pad)[:, None, :]   # (N, 1, Cp)
    beta = _pad_last(e[:, num_features:], c_pad)[:, None, :]
    return gamma.astype(jnp.float32), beta.astype(jnp.float32)


def _finish_moments(s, sq, count):
    """Training-mode BatchNorm2d statistics (biased var, eps=1e-5)."""
    count = jnp.float32(count)
    mean = s / count
    var = jnp.maximum(sq / count - mean * mean, 0.0)
    return mean, lax.rsqrt(var + 1e-5)


# ----------------------------------------------------------------------------
# GenBlock forward (NCHW in, NCHW out)
# ----------------------------------------------------------------------------
def gen_block_forward(x_nchw, labels, params):
    in_c = params["w1"].shape[1]
    out_c = params["w1"].shape[0]
    cin_p = _round_up(in_c, LANE)
    cout_p = _round_up(out_c, LANE)

    N, _, h, w = x_nchw.shape
    x = jnp.transpose(x_nchw, (0, 2, 3, 1))                      # NCHW -> NHWC
    # bf16 in HBM: halves the stats read and the conv-prologue read; the
    # normalization itself is done in f32 inside the kernels.
    xp = _pad_last(x, cin_p).astype(jnp.bfloat16)                # (N, h, w, Cin_p)

    # cond_bn1 statistics on the half-resolution input (pass 1).
    s1, q1 = channel_stats(xp)
    mean1, inv1 = _finish_moments(s1, q1, N * h * w)
    g1, b1 = embedding_gamma_beta(params["embed1"], labels, in_c, cin_p)

    # One nearest 2x upsample shared by the main path and the 1x1 shortcut
    # (CBN+ReLU are pointwise, so they commute with the upsample and are
    # applied inside the conv prologue on the upsampled tiles).
    xu = upsample2x_nearest(xp)                                  # (N, 2h, 2w, Cin_p)

    # snconv2d1: 3x3, fused CBN1+ReLU prologue; epilogue also emits the
    # per-channel sum/sumsq of h1 (no second stats pass over HBM).
    w1 = to_conv_weight(spectral_normalize(params["w1"]), cin_p, cout_p)
    bias1 = _pad_last(params["b1"], cout_p)[None, :].astype(jnp.float32)
    h1, s2, q2 = conv3x3_cbn(xu, mean1, inv1, g1, b1, w1, bias1,
                             emit_stats=True, out_dtype=jnp.bfloat16)

    mean2, inv2 = _finish_moments(s2, q2, N * (2 * h) * (2 * w))
    g2, b2 = embedding_gamma_beta(params["embed2"], labels, out_c, cout_p)

    # snconv2d2 (3x3, fused CBN2+ReLU) + fused snconv2d0 shortcut + residual.
    w2 = to_conv_weight(spectral_normalize(params["w2"]), cout_p, cout_p)
    w0 = to_conv_weight(spectral_normalize(params["w0"]), cin_p, cout_p)[0]  # (Cin_p, Cout_p)
    bias_total = (_pad_last(params["b2"], cout_p) +
                  _pad_last(params["b0"], cout_p))[None, :].astype(jnp.float32)
    out = conv3x3_cbn(h1, mean2, inv2, g2, b2, w2, bias_total,
                      shortcut=(xu, w0), out_dtype=jnp.float32)  # (N, 2h, 2w, Cout_p)

    out = out[..., :out_c]
    return jnp.transpose(out, (0, 3, 1, 2))                      # NHWC -> NCHW


# ----------------------------------------------------------------------------
# Pure-JAX reference (correctness check for the Pallas path)
# ----------------------------------------------------------------------------
def _ref_bn_relu(x, g, b):
    mean = jnp.mean(x, axis=(0, 1, 2), keepdims=True)
    var = jnp.mean((x - mean) ** 2, axis=(0, 1, 2), keepdims=True)
    y = g[:, None, None, :] * ((x - mean) * lax.rsqrt(var + 1e-5)) + b[:, None, None, :]
    return jnp.maximum(y, 0.0)


def _ref_conv(x, w_hwio, b, pad):
    y = lax.conv_general_dilated(
        x, w_hwio, window_strides=(1, 1), padding=[(pad, pad), (pad, pad)],
        dimension_numbers=("NHWC", "HWIO", "NHWC"))
    return y + b[None, None, None, :]


def _ref_embed(embed_w, labels, nf):
    e = jnp.take(embed_w, labels, axis=0)
    return e[:, :nf], e[:, nf:]


def gen_block_reference(x_nchw, labels, params):
    in_c = params["w1"].shape[1]
    out_c = params["w1"].shape[0]
    x = jnp.transpose(x_nchw, (0, 2, 3, 1))
    x0 = x
    g1, b1 = _ref_embed(params["embed1"], labels, in_c)
    h = _ref_bn_relu(x, g1, b1)
    h = jnp.repeat(jnp.repeat(h, 2, axis=1), 2, axis=2)
    w1 = jnp.transpose(spectral_normalize(params["w1"]), (2, 3, 1, 0))
    h = _ref_conv(h, w1, params["b1"], 1)
    g2, b2 = _ref_embed(params["embed2"], labels, out_c)
    h = _ref_bn_relu(h, g2, b2)
    w2 = jnp.transpose(spectral_normalize(params["w2"]), (2, 3, 1, 0))
    h = _ref_conv(h, w2, params["b2"], 1)
    x0 = jnp.repeat(jnp.repeat(x0, 2, axis=1), 2, axis=2)
    w0 = jnp.transpose(spectral_normalize(params["w0"]), (2, 3, 1, 0))
    x0 = _ref_conv(x0, w0, params["b0"], 0)
    return jnp.transpose(h + x0, (0, 3, 1, 2))


# ----------------------------------------------------------------------------
if __name__ == "__main__":
    N, IN_C, OUT_C, H, W, NUM_CLASSES = 2, 4, 8, 16, 16, 10

    key = jax.random.PRNGKey(0)
    kx, kl, k1, k2, k3, kb1, kb2, kb3, ke1, ke2 = jax.random.split(key, 10)

    x = jax.random.normal(kx, (N, IN_C, H, W), jnp.float32)          # NCHW input
    labels = jax.random.randint(kl, (N,), 0, NUM_CLASSES)

    params = {
        # snconv2d1: 3x3, in_c -> out_c
        "w1": jax.random.normal(k1, (OUT_C, IN_C, 3, 3), jnp.float32) * 0.1,
        "b1": jax.random.normal(kb1, (OUT_C,), jnp.float32) * 0.01,
        # snconv2d2: 3x3, out_c -> out_c
        "w2": jax.random.normal(k2, (OUT_C, OUT_C, 3, 3), jnp.float32) * 0.1,
        "b2": jax.random.normal(kb2, (OUT_C,), jnp.float32) * 0.01,
        # snconv2d0 (shortcut): 1x1, in_c -> out_c
        "w0": jax.random.normal(k3, (OUT_C, IN_C, 1, 1), jnp.float32) * 0.1,
        "b0": jax.random.normal(kb3, (OUT_C,), jnp.float32) * 0.01,
        # ConditionalBatchNorm embeddings: module init is gamma=1 / beta=0;
        # add a small perturbation so the per-sample gamma/beta path is tested.
        "embed1": jnp.concatenate(
            [jnp.ones((NUM_CLASSES, IN_C), jnp.float32),
             jnp.zeros((NUM_CLASSES, IN_C), jnp.float32)], axis=1)
        + 0.1 * jax.random.normal(ke1, (NUM_CLASSES, 2 * IN_C), jnp.float32),
        "embed2": jnp.concatenate(
            [jnp.ones((NUM_CLASSES, OUT_C), jnp.float32),
             jnp.zeros((NUM_CLASSES, OUT_C), jnp.float32)], axis=1)
        + 0.1 * jax.random.normal(ke2, (NUM_CLASSES, 2 * OUT_C), jnp.float32),
    }

    out = jax.block_until_ready(gen_block_forward(x, labels, params))
    ref = jax.block_until_ready(gen_block_reference(x, labels, params))

    assert out.shape == (N, OUT_C, 2 * H, 2 * W), out.shape
    # bf16 conv operands / bf16 intermediate activations -> loose tolerance.
    if not bool(jnp.allclose(out, ref, rtol=1e-1, atol=1e-1)):
        err = float(jnp.max(jnp.abs(out - ref)))
        raise AssertionError(
            f"Pallas GenBlock output mismatch vs JAX reference (max abs err {err})")

    print("KERNEL_OK")
</pallas_src>

<mosaic_0001>
module attributes {stable_mosaic.version = 11 : i64} {
  func.func @_stats_kernel(%arg0: i32, %arg1: i32, %arg2: memref<1x16x16x128xbf16, #tpu.memory_space<vmem>>, %arg3: memref<1x1x128xf32, #tpu.memory_space<vmem>>, %arg4: memref<1x1x128xf32, #tpu.memory_space<vmem>>) attributes {dimension_semantics = [#tpu.dimension_semantics<parallel>, #tpu.dimension_semantics<arbitrary>], iteration_bounds = array<i64: 2, 1>, scalar_prefetch = 0 : i64, scratch_operands = 0 : i64, tpu.core_type = #tpu.core_type<tc>, window_params = [{transform_indices = @transform_0, window_bounds = array<i64: 1, 16, 16, 128>}, {transform_indices = @transform_1, window_bounds = array<i64: 1, 1, 128>}, {transform_indices = @transform_2, window_bounds = array<i64: 1, 1, 128>}]} {
    %c0_i32 = arith.constant 0 : i32
    %0 = arith.cmpi eq, %arg1, %c0_i32 : i32
    %1 = arith.extui %0 : i1 to i32
    %c0_i32_0 = arith.constant 0 : i32
    %2 = arith.cmpi ne, %1, %c0_i32_0 : i32
    scf.if %2 {
      %cst_17 = arith.constant 0.000000e+00 : f32
      %17 = vector.broadcast %cst_17 : f32 to vector<1x1x128xf32>
      %c0_18 = arith.constant 0 : index
      %c0_19 = arith.constant 0 : index
      %c0_20 = arith.constant 0 : index
      %18 = vector.load %arg3[%c0_18, %c0_19, %c0_20] : memref<1x1x128xf32, #tpu.memory_space<vmem>>, vector<1x1x128xf32>
      tpu.vector_store %arg3[%c0_18, %c0_19, %c0_20], %17 {strides = array<i32>} : memref<1x1x128xf32, #tpu.memory_space<vmem>>, vector<1x1x128xf32>,
      %cst_21 = arith.constant 0.000000e+00 : f32
      %19 = vector.broadcast %cst_21 : f32 to vector<1x1x128xf32>
      %c0_22 = arith.constant 0 : index
      %c0_23 = arith.constant 0 : index
      %c0_24 = arith.constant 0 : index
      %20 = vector.load %arg4[%c0_22, %c0_23, %c0_24] : memref<1x1x128xf32, #tpu.memory_space<vmem>>, vector<1x1x128xf32>
      tpu.vector_store %arg4[%c0_22, %c0_23, %c0_24], %19 {strides = array<i32>} : memref<1x1x128xf32, #tpu.memory_space<vmem>>, vector<1x1x128xf32>,
    } else {
    }
    %c0 = arith.constant 0 : index
    %c0_1 = arith.constant 0 : index
    %c0_2 = arith.constant 0 : index
    %c0_3 = arith.constant 0 : index
    %3 = vector.load %arg2[%c0, %c0_1, %c0_2, %c0_3] : memref<1x16x16x128xbf16, #tpu.memory_space<vmem>>, vector<1x16x16x128xbf16>
    %4 = vector.shape_cast %3 : vector<1x16x16x128xbf16> to vector<16x16x128xbf16>
    %5 = arith.extf %4 : vector<16x16x128xbf16> to vector<16x16x128xf32>
    %c0_4 = arith.constant 0 : index
    %c0_5 = arith.constant 0 : index
    %c0_6 = arith.constant 0 : index
    %6 = vector.load %arg3[%c0_4, %c0_5, %c0_6] : memref<1x1x128xf32, #tpu.memory_space<vmem>>, vector<1x1x128xf32>
    %cst = arith.constant dense<0.000000e+00> : vector<128xf32>
    %7 = vector.multi_reduction <add>, %5, %cst [0, 1] : vector<16x16x128xf32> to vector<128xf32>
    %8 = vector.shape_cast %7 : vector<128xf32> to vector<1x1x128xf32>
    %9 = arith.addf %6, %8 : vector<1x1x128xf32>
    %c0_7 = arith.constant 0 : index
    %c0_8 = arith.constant 0 : index
    %c0_9 = arith.constant 0 : index
    %10 = vector.load %arg3[%c0_7, %c0_8, %c0_9] : memref<1x1x128xf32, #tpu.memory_space<vmem>>, vector<1x1x128xf32>
    tpu.vector_store %arg3[%c0_7, %c0_8, %c0_9], %9 {strides = array<i32>} : memref<1x1x128xf32, #tpu.memory_space<vmem>>, vector<1x1x128xf32>,
    %c0_10 = arith.constant 0 : index
    %c0_11 = arith.constant 0 : index
    %c0_12 = arith.constant 0 : index
    %11 = vector.load %arg4[%c0_10, %c0_11, %c0_12] : memref<1x1x128xf32, #tpu.memory_space<vmem>>, vector<1x1x128xf32>
    %12 = arith.mulf %5, %5 : vector<16x16x128xf32>
    %cst_13 = arith.constant dense<0.000000e+00> : vector<128xf32>
    %13 = vector.multi_reduction <add>, %12, %cst_13 [0, 1] : vector<16x16x128xf32> to vector<128xf32>
    %14 = vector.shape_cast %13 : vector<128xf32> to vector<1x1x128xf32>
    %15 = arith.addf %11, %14 : vector<1x1x128xf32>
    %c0_14 = arith.constant 0 : index
    %c0_15 = arith.constant 0 : index
    %c0_16 = arith.constant 0 : index
    %16 = vector.load %arg4[%c0_14, %c0_15, %c0_16] : memref<1x1x128xf32, #tpu.memory_space<vmem>>, vector<1x1x128xf32>
    tpu.vector_store %arg4[%c0_14, %c0_15, %c0_16], %15 {strides = array<i32>} : memref<1x1x128xf32, #tpu.memory_space<vmem>>, vector<1x1x128xf32>,
    return
  }
  func.func @transform_0(%arg0: i32, %arg1: i32) -> (i32, i32, i32, i32) {
    %c0_i32 = arith.constant 0 : i32
    %c0_i32_0 = arith.constant 0 : i32
    %c0_i32_1 = arith.constant 0 : i32
    return %arg0, %arg1, %c0_i32, %c0_i32_0 : i32, i32, i32, i32
  }
  func.func @transform_1(%arg0: i32, %arg1: i32) -> (i32, i32, i32) {
    %c0_i32 = arith.constant 0 : i32
    %c0_i32_0 = arith.constant 0 : i32
    %c0_i32_1 = arith.constant 0 : i32
    return %arg0, %c0_i32, %c0_i32_0 : i32, i32, i32
  }
  func.func @transform_2(%arg0: i32, %arg1: i32) -> (i32, i32, i32) {
    %c0_i32 = arith.constant 0 : i32
    %c0_i32_0 = arith.constant 0 : i32
    %c0_i32_1 = arith.constant 0 : i32
    return %arg0, %c0_i32, %c0_i32_0 : i32, i32, i32
  }
}

</mosaic_0001>

<llo_original>
// kernel: tpu_custom_call.1
$region0: #{tpu_custom_call.1}
  #allocation0 [shape = 'u32[]', space=smem, size = 0x4, offset = 0x4, fixed_abs, tag = 'smem constant byte address 0x4 - core index']
  #allocation1 [shape = 'u32[144,128]{1,0:T(1,128)}', space=vmem, size = 0x12000, scoped, tag = 'internal scratch']
  %s0 = inlined_call_operand.hbm [shape: bf16[2,16,16,128], index: 0, kind: input, shape index: {}]
  %s1 = inlined_call_operand.hbm [shape: f32[2,1,128], index: 1, kind: output, shape index: {0}]
  %s2 = inlined_call_operand.hbm [shape: f32[2,1,128], index: 2, kind: output, shape index: {1}]
  %3 = xla_tuple %s1, %s2
  %s4 = sld [smem:[#allocation0]]
  $region53: #{tpu_custom_call.1} parent=0
    _
  %s6 = ssub.s32 1, %s4
  %s7 = scalar_select 0, %s6, %s4
  $region1: #{tpu_custom_call.1} parent=0
    #allocation2 [shape = 'u8[131072]{0}', space=vmem, size = 0x20000, scoped, tag = 'input window, operand 0']
    #allocation3 [shape = 's32[2]{0}', space=sflag, size = 0x8, scoped, tag = 'scoped memory for tpu_custom_call.1']
    #allocation4 [shape = 's32[2]{0}', space=sflag, size = 0x8, scoped, tag = 'scoped memory for tpu_custom_call.1']
    #allocation5 [shape = 'u8[1024]{0}', space=vmem, size = 0x400, scoped, tag = 'output window, operand 0']
    #allocation6 [shape = 'u8[1024]{0}', space=vmem, size = 0x400, scoped, tag = 'output window, operand 1']
    #allocation7 [shape = 's32[2]{0}', space=sflag, size = 0x8, scoped, tag = 'scoped memory for tpu_custom_call.1']
    %8 = vsyncpa [#allocation3], 0
    %s9 = scalar_lea.sflag [#allocation3], 1
    %10 = vsyncpa %s9, 0
    %11 = vsyncpa [#allocation4], 0
    %s12 = scalar_lea.sflag [#allocation4], 1
    %13 = vsyncpa %s12, 0
    %14 = vsyncpa [#allocation7], 0
    %s15 = scalar_lea.sflag [#allocation7], 1
    %16 = vsyncpa %s15, 0
    loop: start=0, step=1, limit=4
    $region2: #{tpu_custom_call.1} parent=1 // loop_pre_header
      _
    $region3: #{tpu_custom_call.1} parent=1 // loop_header
      %s18 = sphi 0, %s22
      %p19 = scmp.ge.s32.totalorder %s18, 4
      %s25 = sphi 0, %s37
      %s26 = sphi 0, %s33
      %s27 = sphi 0, %s25
      %s28 = sphi 0, %s26
      %s29 = sphi 0, %s27
      %s30 = sphi 0, %s28
      %s42 = sphi 0, %s44
      %s45 = sphi 0, %s42
      %s46 = sphi 0, %s45
      %s62 = sphi 0, %s46
      %s68 = sphi 0, %s70
      %s71 = sphi 0, %s68
      %s72 = sphi 0, %s71
      %s88 = sphi 0, %s72
      %s94 = sphi 0, %s96
      %s97 = sphi 0, %s94
      %s98 = sphi 0, %s97
      %s114 = sphi 0, %s98
    $region4: #{tpu_custom_call.1} parent=1 // loop_header_branch
      %21 = sbr.rel (%p19) target = $region8
    $region5: #{tpu_custom_call.1} parent=1 // loop_body
      %s23 = ssub.s32 %s18, 1
      %s24 = ssub.s32 %s18, 2
      %s31 = sadd.s32 1, %s26
      %p32 = scmp.ge.s32.totalorder %s31, 1
      %s33 = scalar_select %p32, 0, %s31
      %s34 = sadd.s32 1, %s25
      %s35 = scalar_select %p32, %s34, %s25
      %p36 = scmp.ge.s32.totalorder %s35, 2
      %s37 = scalar_select %p36, 0, %s35
      %s38 = ssub.s32 %s25, %s37
      %s39 = ssub.s32 %s26, %s33
      %s40 = sor.u32 %s38, %s39
      %p41 = scmp.eq.s32.totalorder %s40, 0
      %s43 = sadd.s32 %s42, 1
      %s44 = scalar_select %p41, %s42, %s43
      %p47 = pneg %p41
      %p48 = scmp.eq.s32.totalorder %s18, 1
      %p49 = por %p47, %p48
      %p50 = scmp.ne.s32.totalorder %s42, %s45
      %p51 = scmp.eq.s32.totalorder %s18, 0
      %p52 = por %p50, %p51
      %p53 = scmp.ne.s32.totalorder %s42, %s45
      %p54 = scmp.eq.s32.totalorder %s23, 1
      %p55 = por %p53, %p54
      %p56 = scmp.ne.s32.totalorder %s45, %s46
      %p57 = scmp.eq.s32.totalorder %s23, 0
      %p58 = por %p56, %p57
      %p59 = scmp.ne.s32.totalorder %s45, %s46
      %p60 = scmp.eq.s32.totalorder %s24, 1
      %p61 = por %p59, %p60
      %p63 = scmp.ne.s32.totalorder %s46, %s62
      %p64 = scmp.eq.s32.totalorder %s24, 0
      %p65 = por %p63, %p64
      %s66 = ssub.s32 %s25, %s37
      %p67 = scmp.eq.s32.totalorder %s66, 0
      %s69 = sadd.s32 %s68, 1
      %s70 = scalar_select %p67, %s68, %s69
      %p73 = pneg %p67
      %p74 = scmp.eq.s32.totalorder %s18, 1
      %p75 = por %p73, %p74
      %p76 = scmp.ne.s32.totalorder %s68, %s71
      %p77 = scmp.eq.s32.totalorder %s18, 0
      %p78 = por %p76, %p77
      %p79 = scmp.ne.s32.totalorder %s68, %s71
      %p80 = scmp.eq.s32.totalorder %s23, 1
      %p81 = por %p79, %p80
      %p82 = scmp.ne.s32.totalorder %s71, %s72
      %p83 = scmp.eq.s32.totalorder %s23, 0
      %p84 = por %p82, %p83
      %p85 = scmp.ne.s32.totalorder %s71, %s72
      %p86 = scmp.eq.s32.totalorder %s24, 1
      %p87 = por %p85, %p86
      %p89 = scmp.ne.s32.totalorder %s72, %s88
      %p90 = scmp.eq.s32.totalorder %s24, 0
      %p91 = por %p89, %p90
      %s92 = ssub.s32 %s25, %s37
      %p93 = scmp.eq.s32.totalorder %s92, 0
      %s95 = sadd.s32 %s94, 1
      %s96 = scalar_select %p93, %s94, %s95
      %p99 = pneg %p93
      %p100 = scmp.eq.s32.totalorder %s18, 1
      %p101 = por %p99, %p100
      %p102 = scmp.ne.s32.totalorder %s94, %s97
      %p103 = scmp.eq.s32.totalorder %s18, 0
      %p104 = por %p102, %p103
      %p105 = scmp.ne.s32.totalorder %s94, %s97
      %p106 = scmp.eq.s32.totalorder %s23, 1
      %p107 = por %p105, %p106
      %p108 = scmp.ne.s32.totalorder %s97, %s98
      %p109 = scmp.eq.s32.totalorder %s23, 0
      %p110 = por %p108, %p109
      %p111 = scmp.ne.s32.totalorder %s97, %s98
      %p112 = scmp.eq.s32.totalorder %s24, 1
      %p113 = por %p111, %p112
      %p115 = scmp.ne.s32.totalorder %s98, %s114
      %p116 = scmp.eq.s32.totalorder %s24, 0
      %p117 = por %p115, %p116
      %p118 = scmp.le.s32.totalorder 1, %s18
      %p119 = scmp.lt.s32.totalorder %s18, 3
      %p120 = pnand %p118, %p119
      %p121 = pneg %p120
      // Predicated region
      $region9: #{tpu_custom_call.1} parent=5 // pred_check
        _
      $region10: #{tpu_custom_call.1} parent=5 // pred_check_branch
        %123 = sbr.rel (%p120) target = $region12
      $region11: #{tpu_custom_call.1} parent=5 // pred_region
        %s124 = ssub.s32 %s18, 1
      $region12: #{tpu_custom_call.1} parent=5 // pred_fallthru
        _
      %p125 = scmp.lt.s32.totalorder %s18, 2
      // Predicated region
      $region13: #{tpu_custom_call.1} parent=5 // pred_check
        %p126 = pneg %p125
      $region14: #{tpu_custom_call.1} parent=5 // pred_check_branch
        %128 = sbr.rel (%p126) target = $region16
      $region15: #{tpu_custom_call.1} parent=5 // pred_region
        // Predicated region
        $region17: #{tpu_custom_call.1} parent=15 // pred_check
          %p129 = pneg %p52
        $region18: #{tpu_custom_call.1} parent=15 // pred_check_branch
          %131 = sbr.rel (%p129) target = $region20
        $region19: #{tpu_custom_call.1} parent=15 // pred_region
          %s132 = sand.u32 %s42, 1
          %s133 = scalar_lea.sflag [#allocation3], %s132
          %s134 = sand.u32 %s42, 1
          %s135 = smul.addr %s134, 128
          %s136 = scalar_lea.vmem [#allocation2], %s135
          %s137 = smul.u32 16, %s26
          %s139 = ssub.s32 2048, 2048
          %140 = vsyncadd %s133, %s139
          %s141 = smul.addr %s137, 2
          %s142 = smul.addr %s25, 32
          %s143 = sadd.s32 %s141, %s142
          %s144 = smul.addr %s143, 64
          %s145 = scalar_lea.hbm %s0, %s144
          %s146 = sshll.u32 %s136, 4
          %s147 = int_to_ptr.vmem [resolvable:$true] %s146
          %152 = dma.hbm_to_vmem [thread:$0]  %s145, 2048, %s147, %s133, 64, 64, 4
        $region20: #{tpu_custom_call.1} parent=15 // pred_fallthru
          _
      $region16: #{tpu_custom_call.1} parent=5 // pred_fallthru
        _
      %p153 = scmp.le.s32.totalorder 1, %s18
      %p154 = scmp.lt.s32.totalorder %s18, 3
      %p155 = pnand %p153, %p154
      %p156 = pneg %p155
      // Predicated region
      $region21: #{tpu_custom_call.1} parent=5 // pred_check
        _
      $region22: #{tpu_custom_call.1} parent=5 // pred_check_branch
        %158 = sbr.rel (%p155) target = $region24
      $region23: #{tpu_custom_call.1} parent=5 // pred_region
        %s159 = ssub.s32 %s18, 1
        %s160 = sand.u32 %s45, 1
        %s161 = scalar_lea.sflag [#allocation3], %s160
        %s162 = sand.u32 %s45, 1
        %s163 = smul.addr %s162, 128
        %s164 = scalar_lea.vmem [#allocation2], %s163
        // Predicated region
        $region25: #{tpu_custom_call.1} parent=23 // pred_check
          %p165 = pneg %p58
        $region26: #{tpu_custom_call.1} parent=23 // pred_check_branch
          %167 = sbr.rel (%p165) target = $region28
        $region27: #{tpu_custom_call.1} parent=23 // pred_region
          %168 = dma.done %s161, 2048
        $region28: #{tpu_custom_call.1} parent=23 // pred_fallthru
          _
        %s169 = sand.u32 %s45, 1
        %s170 = scalar_lea.sflag [#allocation3], %s169
        %s171 = sand.u32 %s45, 1
        %s172 = smul.addr %s171, 128
        %s173 = scalar_lea.vmem [#allocation2], %s172
        %p174 = pneg %p58
        %p175 = pneg %p55
        %p176 = pneg %p84
        %p177 = pneg %p81
        %s178 = sand.u32 %s71, 1
        %s179 = scalar_lea.sflag [#allocation4], %s178
        %s180 = sand.u32 %s71, 1
        %s181 = scalar_lea.vmem [#allocation5], %s180
        %p182 = pneg %p110
        %p183 = pneg %p107
        %s184 = sand.u32 %s97, 1
        %s185 = scalar_lea.sflag [#allocation7], %s184
        %s186 = sand.u32 %s97, 1
        %s187 = scalar_lea.vmem [#allocation6], %s186
        %s188 = smul.u32 16, %s28
        %p189 = scmp.eq.s32.totalorder %s28, 0
        // Predicated region
        $region29: #{tpu_custom_call.1} parent=23 // pred_check
          %p190 = pneg %p189
        $region30: #{tpu_custom_call.1} parent=23 // pred_check_branch
          %192 = sbr.rel (%p190) target = $region32
        $region31: #{tpu_custom_call.1} parent=23 // pred_region
          %193 = vst [vmem:[%s181] sm:$0x1] 0.0
          %194 = vst [vmem:[%s187] sm:$0x1] 0.0
        $region32: #{tpu_custom_call.1} parent=23 // pred_fallthru
          _
        %v195 = vld [vmem:[%s164] sm:$0xf]
        %v196 = vld [vmem:[%s164 + $0x4] sm:$0xf]
        %v197 = vld [vmem:[%s164 + $0x8] sm:$0xf]
        %v198 = vld [vmem:[%s164 + $0xc] sm:$0xf]
        %v199 = vld [vmem:[%s164 + $0x10] sm:$0xf]
        %v200 = vld [vmem:[%s164 + $0x14] sm:$0xf]
        %v201 = vld [vmem:[%s164 + $0x18] sm:$0xf]
        %v202 = vld [vmem:[%s164 + $0x1c] sm:$0xf]
        %v203 = vld [vmem:[%s164 + $0x20] sm:$0xf]
        %v204 = vld [vmem:[%s164 + $0x24] sm:$0xf]
        %v205 = vld [vmem:[%s164 + $0x28] sm:$0xf]
        %v206 = vld [vmem:[%s164 + $0x2c] sm:$0xf]
        %v207 = vld [vmem:[%s164 + $0x30] sm:$0xf]
        %v208 = vld [vmem:[%s164 + $0x34] sm:$0xf]
        %v209 = vld [vmem:[%s164 + $0x38] sm:$0xf]
        %v210 = vld [vmem:[%s164 + $0x3c] sm:$0xf]
        %v211 = vld [vmem:[%s164 + $0x40] sm:$0xf]
        %v212 = vld [vmem:[%s164 + $0x44] sm:$0xf]
        %v213 = vld [vmem:[%s164 + $0x48] sm:$0xf]
        %v214 = vld [vmem:[%s164 + $0x4c] sm:$0xf]
        %v215 = vld [vmem:[%s164 + $0x50] sm:$0xf]
        %v216 = vld [vmem:[%s164 + $0x54] sm:$0xf]
        %v217 = vld [vmem:[%s164 + $0x58] sm:$0xf]
        %v218 = vld [vmem:[%s164 + $0x5c] sm:$0xf]
        %v219 = vld [vmem:[%s164 + $0x60] sm:$0xf]
        %v220 = vld [vmem:[%s164 + $0x64] sm:$0xf]
        %v221 = vld [vmem:[%s164 + $0x68] sm:$0xf]
        %v222 = vld [vmem:[%s164 + $0x6c] sm:$0xf]
        %v223 = vld [vmem:[%s164 + $0x70] sm:$0xf]
        %v224 = vld [vmem:[%s164 + $0x74] sm:$0xf]
        %v225 = vld [vmem:[%s164 + $0x78] sm:$0xf]
        %v226 = vld [vmem:[%s164 + $0x7c] sm:$0xf]
        %v227 = vunpack.c.l.bf16 %v195
        %v228 = vunpack.c.l.bf16 %v196
        %v229 = vunpack.c.l.bf16 %v197
        %v230 = vunpack.c.l.bf16 %v198
        %v231 = vunpack.c.l.bf16 %v199
        %v232 = vunpack.c.l.bf16 %v200
        %v233 = vunpack.c.l.bf16 %v201
        %v234 = vunpack.c.l.bf16 %v202
        %v235 = vunpack.c.l.bf16 %v203
        %v236 = vunpack.c.l.bf16 %v204
        %v237 = vunpack.c.l.bf16 %v205
        %v238 = vunpack.c.l.bf16 %v206
        %v239 = vunpack.c.l.bf16 %v207
        %v240 = vunpack.c.l.bf16 %v208
        %v241 = vunpack.c.l.bf16 %v209
        %v242 = vunpack.c.l.bf16 %v210
        %v243 = vunpack.c.l.bf16 %v211
        %v244 = vunpack.c.l.bf16 %v212
        %v245 = vunpack.c.l.bf16 %v213
        %v246 = vunpack.c.l.bf16 %v214
        %v247 = vunpack.c.l.bf16 %v215
        %v248 = vunpack.c.l.bf16 %v216
        %v249 = vunpack.c.l.bf16 %v217
        %v250 = vunpack.c.l.bf16 %v218
        %v251 = vunpack.c.l.bf16 %v219
        %v252 = vunpack.c.l.bf16 %v220
        %v253 = vunpack.c.l.bf16 %v221
        %v254 = vunpack.c.l.bf16 %v222
        %v255 = vunpack.c.l.bf16 %v223
        %v256 = vunpack.c.l.bf16 %v224
        %v257 = vunpack.c.l.bf16 %v225
        %v258 = vunpack.c.l.bf16 %v226
        %v259 = vld [vmem:[%s181] sm:$0x1]
        %v260 = vadd.f32 %v227, %v228
        %v261 = vadd.f32 %v260, %v229
        %v262 = vadd.f32 %v261, %v230
        %v263 = vadd.f32 %v262, %v231
        %v264 = vadd.f32 %v263, %v232
        %v265 = vadd.f32 %v264, %v233
        %v266 = vadd.f32 %v265, %v234
        %v267 = vadd.f32 %v266, %v235
        %v268 = vadd.f32 %v267, %v236
        %v269 = vadd.f32 %v268, %v237
        %v270 = vadd.f32 %v269, %v238
        %v271 = vadd.f32 %v270, %v239
        %v272 = vadd.f32 %v271, %v240
        %v273 = vadd.f32 %v272, %v241
        %v274 = vadd.f32 %v273, %v242
        %v275 = vadd.f32 %v274, %v243
        %v276 = vadd.f32 %v275, %v244
        %v277 = vadd.f32 %v276, %v245
        %v278 = vadd.f32 %v277, %v246
        %v279 = vadd.f32 %v278, %v247
        %v280 = vadd.f32 %v279, %v248
        %v281 = vadd.f32 %v280, %v249
        %v282 = vadd.f32 %v281, %v250
        %v283 = vadd.f32 %v282, %v251
        %v284 = vadd.f32 %v283, %v252
        %v285 = vadd.f32 %v284, %v253
        %v286 = vadd.f32 %v285, %v254
        %v287 = vadd.f32 %v286, %v255
        %v288 = vadd.f32 %v287, %v256
        %v289 = vadd.f32 %v288, %v257
        %v290 = vadd.f32 %v289, %v258
        %v291 = vrot.slane %v290, 4
        %v292 = vadd.f32 %v290, %v291
        %v293 = vrot.slane %v292, 2
        %v294 = vadd.f32 %v292, %v293
        %v295 = vrot.slane %v294, 1
        %v296 = vadd.f32 %v294, %v295
        %v297 = vadd.f32 %v259, %v296
        %298 = vst [vmem:[%s181] sm:$0x1] %v297
        %v299 = vld [vmem:[%s187] sm:$0x1]
        %v300 = vmul.f32 %v227, %v227
        %v301 = vmul.f32 %v228, %v228
        %v302 = vmul.f32 %v229, %v229
        %v303 = vmul.f32 %v230, %v230
        %v304 = vmul.f32 %v231, %v231
        %v305 = vmul.f32 %v232, %v232
        %v306 = vmul.f32 %v233, %v233
        %v307 = vmul.f32 %v234, %v234
        %v308 = vmul.f32 %v235, %v235
        %v309 = vmul.f32 %v236, %v236
        %v310 = vmul.f32 %v237, %v237
        %v311 = vmul.f32 %v238, %v238
        %v312 = vmul.f32 %v239, %v239
        %v313 = vmul.f32 %v240, %v240
        %v314 = vmul.f32 %v241, %v241
        %v315 = vmul.f32 %v242, %v242
        %v316 = vmul.f32 %v243, %v243
        %v317 = vmul.f32 %v244, %v244
        %v318 = vmul.f32 %v245, %v245
        %v319 = vmul.f32 %v246, %v246
        %v320 = vmul.f32 %v247, %v247
        %v321 = vmul.f32 %v248, %v248
        %v322 = vmul.f32 %v249, %v249
        %v323 = vmul.f32 %v250, %v250
        %v324 = vmul.f32 %v251, %v251
        %v325 = vmul.f32 %v252, %v252
        %v326 = vmul.f32 %v253, %v253
        %v327 = vmul.f32 %v254, %v254
        %v328 = vmul.f32 %v255, %v255
        %v329 = vmul.f32 %v256, %v256
        %v330 = vmul.f32 %v257, %v257
        %v331 = vmul.f32 %v258, %v258
        %v332 = vadd.f32 %v300, %v301
        %v333 = vadd.f32 %v332, %v302
        %v334 = vadd.f32 %v333, %v303
        %v335 = vadd.f32 %v334, %v304
        %v336 = vadd.f32 %v335, %v305
        %v337 = vadd.f32 %v336, %v306
        %v338 = vadd.f32 %v337, %v307
        %v339 = vadd.f32 %v338, %v308
        %v340 = vadd.f32 %v339, %v309
        %v341 = vadd.f32 %v340, %v310
        %v342 = vadd.f32 %v341, %v311
        %v343 = vadd.f32 %v342, %v312
        %v344 = vadd.f32 %v343, %v313
        %v345 = vadd.f32 %v344, %v314
        %v346 = vadd.f32 %v345, %v315
        %v347 = vadd.f32 %v346, %v316
        %v348 = vadd.f32 %v347, %v317
        %v349 = vadd.f32 %v348, %v318
        %v350 = vadd.f32 %v349, %v319
        %v351 = vadd.f32 %v350, %v320
        %v352 = vadd.f32 %v351, %v321
        %v353 = vadd.f32 %v352, %v322
        %v354 = vadd.f32 %v353, %v323
        %v355 = vadd.f32 %v354, %v324
        %v356 = vadd.f32 %v355, %v325
        %v357 = vadd.f32 %v356, %v326
        %v358 = vadd.f32 %v357, %v327
        %v359 = vadd.f32 %v358, %v328
        %v360 = vadd.f32 %v359, %v329
        %v361 = vadd.f32 %v360, %v330
        %v362 = vadd.f32 %v361, %v331
        %v363 = vrot.slane %v362, 4
        %v364 = vadd.f32 %v362, %v363
        %v365 = vrot.slane %v364, 2
        %v366 = vadd.f32 %v364, %v365
        %v367 = vrot.slane %v366, 1
        %v368 = vadd.f32 %v366, %v367
        %v369 = vadd.f32 %v299, %v368
        %370 = vst [vmem:[%s187] sm:$0x1] %v369
        %s371 = sand.u32 %s71, 1
        %s372 = scalar_lea.sflag [#allocation4], %s371
        %s373 = sand.u32 %s71, 1
        %s374 = scalar_lea.vmem [#allocation5], %s373
        %s375 = sand.u32 %s97, 1
        %s376 = scalar_lea.sflag [#allocation7], %s375
        %s377 = sand.u32 %s97, 1
        %s378 = scalar_lea.vmem [#allocation6], %s377
        // Predicated region
        $region33: #{tpu_custom_call.1} parent=23 // pred_check
          %p379 = pneg %p81
        $region34: #{tpu_custom_call.1} parent=23 // pred_check_branch
          %381 = sbr.rel (%p379) target = $region36
        $region35: #{tpu_custom_call.1} parent=23 // pred_region
          %s383 = ssub.s32 16, 16
          %384 = vsyncadd %s372, %s383
          %s385 = smul.addr %s27, 16
          %s386 = scalar_lea.hbm %s1, %s385
          %s388 = sshll.u32 %s374, 4
          %s389 = int_to_ptr.vmem [resolvable:$true] %s388
          %391 = dma.vmem_to_hbm [thread:$0]  %s389, 16, %s386, %s372
        $region36: #{tpu_custom_call.1} parent=23 // pred_fallthru
          _
        // Predicated region
        $region37: #{tpu_custom_call.1} parent=23 // pred_check
          %p392 = pneg %p107
        $region38: #{tpu_custom_call.1} parent=23 // pred_check_branch
          %394 = sbr.rel (%p392) target = $region40
        $region39: #{tpu_custom_call.1} parent=23 // pred_region
          %s396 = ssub.s32 16, 16
          %397 = vsyncadd %s376, %s396
          %s398 = smul.addr %s27, 16
          %s399 = scalar_lea.hbm %s2, %s398
          %s401 = sshll.u32 %s378, 4
          %s402 = int_to_ptr.vmem [resolvable:$true] %s401
          %404 = dma.vmem_to_hbm [thread:$0]  %s402, 16, %s399, %s376
        $region40: #{tpu_custom_call.1} parent=23 // pred_fallthru
          _
      $region24: #{tpu_custom_call.1} parent=5 // pred_fallthru
        _
      %p405 = scmp.le.s32.totalorder 2, %s18
      // Predicated region
      $region41: #{tpu_custom_call.1} parent=5 // pred_check
        %p406 = pneg %p405
      $region42: #{tpu_custom_call.1} parent=5 // pred_check_branch
        %408 = sbr.rel (%p406) target = $region44
      $region43: #{tpu_custom_call.1} parent=5 // pred_region
        %s409 = ssub.s32 %s18, 2
        // Predicated region
        $region45: #{tpu_custom_call.1} parent=43 // pred_check
          %p410 = pneg %p87
        $region46: #{tpu_custom_call.1} parent=43 // pred_check_branch
          %412 = sbr.rel (%p410) target = $region48
        $region47: #{tpu_custom_call.1} parent=43 // pred_region
          %s413 = sand.u32 %s72, 1
          %s414 = scalar_lea.sflag [#allocation4], %s413
          %s415 = sand.u32 %s72, 1
          %s416 = scalar_lea.vmem [#allocation5], %s415
          %417 = dma.done %s414, 16
        $region48: #{tpu_custom_call.1} parent=43 // pred_fallthru
          _
        // Predicated region
        $region49: #{tpu_custom_call.1} parent=43 // pred_check
          %p418 = pneg %p113
        $region50: #{tpu_custom_call.1} parent=43 // pred_check_branch
          %420 = sbr.rel (%p418) target = $region52
        $region51: #{tpu_custom_call.1} parent=43 // pred_region
          %s421 = sand.u32 %s98, 1
          %s422 = scalar_lea.sflag [#allocation7], %s421
          %s423 = sand.u32 %s98, 1
          %s424 = scalar_lea.vmem [#allocation6], %s423
          %425 = dma.done %s422, 16
        $region52: #{tpu_custom_call.1} parent=43 // pred_fallthru
          _
      $region44: #{tpu_custom_call.1} parent=5 // pred_fallthru
        _
    $region6: #{tpu_custom_call.1} parent=1 // loop_footer
      %s22 = sadd.s32 1, %s18
    $region7: #{tpu_custom_call.1} parent=1 // loop_footer_branch
      %17 = sbr.rel target = $region3
    $region8: #{tpu_custom_call.1} parent=1 // loop_exit
      _
    %426 = vsyncpa [#allocation3], 1
    %s427 = scalar_lea.sflag [#allocation3], 1
    %428 = vsyncpa %s427, 1
    %429 = vsyncpa [#allocation4], 1
    %s430 = scalar_lea.sflag [#allocation4], 1
    %431 = vsyncpa %s430, 1
    %432 = vsyncpa [#allocation7], 1
    %s433 = scalar_lea.sflag [#allocation7], 1
    %434 = vsyncpa %s433, 1

</llo_original>
